<compile_context>
chip_gen: v7x
topology: tpu7x:2x2x1
jax: 0.10.0
libtpu: 0.0.40
codegen_flags: <defaults>
</compile_context>

<pallas_src>
import jax
import jax.numpy as jnp
from jax.experimental import pallas as pl
from jax.experimental.pallas import tpu as pltpu

D_IN, D_OUT = 100, 4
# Per-layer (in, out) dims after fusing the first two linears.
LAYER_DIMS = [(100, 100), (100, 50), (50, 70), (70, 20), (20, 4)]
MAX_TILE_B = 256  # fills MXU rows on v6e/v7x (256x256); multiple of 128 for v5e


def _sigmoid(x):
    # sigmoid(x) == 0.5 * tanh(0.5 * x) + 0.5 : one EUP op, no VALU divide.
    return 0.5 * jnp.tanh(0.5 * x) + 0.5


def mlp_kernel(x_ref,
               w_f_ref, b_f_ref,      # fused 100 -> 100  (input_layer ∘ hidden[0])
               w_h1_ref, b_h1_ref,    # 100 -> 50
               w_h2_ref, b_h2_ref,    # 50  -> 70
               w_h3_ref, b_h3_ref,    # 70  -> 20
               w_out_ref, b_out_ref,  # 20  -> 4
               o_ref):
    h = x_ref[...]
    h = _sigmoid(jnp.dot(h, w_f_ref[...], preferred_element_type=jnp.float32) + b_f_ref[...])
    h = _sigmoid(jnp.dot(h, w_h1_ref[...], preferred_element_type=jnp.float32) + b_h1_ref[...])
    h = _sigmoid(jnp.dot(h, w_h2_ref[...], preferred_element_type=jnp.float32) + b_h2_ref[...])
    h = _sigmoid(jnp.dot(h, w_h3_ref[...], preferred_element_type=jnp.float32) + b_h3_ref[...])
    # output_layer: Linear(20 -> 4), no activation (Dropout == identity at inference).
    o_ref[...] = jnp.dot(h, w_out_ref[...], preferred_element_type=jnp.float32) + b_out_ref[...]


def _resident_spec(shape):
    # Whole-array block, same block index every grid step -> stays resident in VMEM.
    return pl.BlockSpec(shape, lambda i, _n=len(shape): (0,) * _n)


@jax.jit
def net_forward(x, fparams):
    """x: (B, 100) f32. fparams: fused, pre-transposed weights (in,out) and biases (1,out)."""
    B = x.shape[0]

    # Pick a batch tile: big enough to fill MXU rows, padded to a multiple of 8 sublanes.
    if B <= MAX_TILE_B:
        tile_b = max(8, pl.cdiv(B, 8) * 8)
        b_pad = tile_b
    else:
        tile_b = MAX_TILE_B
        b_pad = pl.cdiv(B, tile_b) * tile_b

    if b_pad != B:
        x = jnp.pad(x, ((0, b_pad - B), (0, 0)))

    flat = [
        fparams["w_f"], fparams["b_f"],
        fparams["w_h1"], fparams["b_h1"],
        fparams["w_h2"], fparams["b_h2"],
        fparams["w_h3"], fparams["b_h3"],
        fparams["w_out"], fparams["b_out"],
    ]

    grid = (b_pad // tile_b,)
    in_specs = [pl.BlockSpec((tile_b, D_IN), lambda i: (i, 0))]
    in_specs += [_resident_spec(p.shape) for p in flat]
    out_spec = pl.BlockSpec((tile_b, D_OUT), lambda i: (i, 0))

    flops = 2 * b_pad * sum(m * n for m, n in LAYER_DIMS)
    transcendentals = b_pad * sum(n for _, n in LAYER_DIMS[:-1])  # one tanh per sigmoid elem
    bytes_accessed = (b_pad * D_IN * 4
                      + sum(int(p.size) * 4 for p in flat)
                      + b_pad * D_OUT * 4)

    out = pl.pallas_call(
        mlp_kernel,
        out_shape=jax.ShapeDtypeStruct((b_pad, D_OUT), jnp.float32),
        grid=grid,
        in_specs=in_specs,
        out_specs=out_spec,
        compiler_params=pltpu.CompilerParams(
            dimension_semantics=("parallel",)),
        cost_estimate=pl.CostEstimate(
            flops=flops,
            transcendentals=transcendentals,
            bytes_accessed=bytes_accessed),
    )(x, *flat)

    return out[:B] if b_pad != B else out


def init_params(key):
    """Deterministic init mimicking PyTorch nn.Linear default:
    U(-1/sqrt(fan_in), 1/sqrt(fan_in)). Weights stored pre-transposed as (in, out)."""
    dims = [
        ("in",  100, 50),
        ("h0",   50, 100),
        ("h1",  100, 50),
        ("h2",   50, 70),
        ("h3",   70, 20),
        ("out",  20, 4),
    ]
    params = {}
    for name, fan_in, fan_out in dims:
        key, kw, kb = jax.random.split(key, 3)
        bound = 1.0 / jnp.sqrt(jnp.float32(fan_in))
        params[f"w_{name}"] = jax.random.uniform(
            kw, (fan_in, fan_out), jnp.float32, -bound, bound)
        params[f"b_{name}"] = jax.random.uniform(
            kb, (1, fan_out), jnp.float32, -bound, bound)
    return params


def fuse_params(params):
    """Fold the activation-free input Linear(100,50) into the first hidden Linear(50,100)."""
    w_f = params["w_in"] @ params["w_h0"]                   # (100, 100)
    b_f = params["b_in"] @ params["w_h0"] + params["b_h0"]  # (1, 100)
    return {
        "w_f": w_f, "b_f": b_f,
        "w_h1": params["w_h1"], "b_h1": params["b_h1"],
        "w_h2": params["w_h2"], "b_h2": params["b_h2"],
        "w_h3": params["w_h3"], "b_h3": params["b_h3"],
        "w_out": params["w_out"], "b_out": params["b_out"],
    }


def reference_forward(x, params):
    """Pure-JAX reference with the unfused layer structure (eval-mode dropout = identity)."""
    h = x @ params["w_in"] + params["b_in"]
    h = jax.nn.sigmoid(h @ params["w_h0"] + params["b_h0"])
    h = jax.nn.sigmoid(h @ params["w_h1"] + params["b_h1"])
    h = jax.nn.sigmoid(h @ params["w_h2"] + params["b_h2"])
    h = jax.nn.sigmoid(h @ params["w_h3"] + params["b_h3"])
    return h @ params["w_out"] + params["b_out"]


if __name__ == "__main__":
    key = jax.random.PRNGKey(0)
    key, kx1, kx2 = jax.random.split(key, 3)

    params = init_params(key)
    fparams = fuse_params(params)

    # Small-batch check (single grid step, batch padded 2 -> 8).
    B_small = 2
    x_small = jax.random.normal(kx1, (B_small, D_IN), jnp.float32)
    out_small = jax.block_until_ready(net_forward(x_small, fparams))
    ref_small = reference_forward(x_small, params)
    assert out_small.shape == (B_small, D_OUT), out_small.shape
    assert jnp.allclose(out_small, ref_small, atol=1e-4, rtol=1e-4), (
        float(jnp.max(jnp.abs(out_small - ref_small))))

    # Larger batch exercising the tiled/padded pipeline path (300 -> 512, tile 256, grid=(2,)).
    B_big = 300
    x_big = jax.random.normal(kx2, (B_big, D_IN), jnp.float32)
    out_big = jax.block_until_ready(net_forward(x_big, fparams))
    ref_big = reference_forward(x_big, params)
    assert out_big.shape == (B_big, D_OUT), out_big.shape
    assert jnp.allclose(out_big, ref_big, atol=1e-4, rtol=1e-4), (
        float(jnp.max(jnp.abs(out_big - ref_big))))

    print("KERNEL_OK")
</pallas_src>

<mosaic_0001>
module attributes {stable_mosaic.version = 11 : i64} {
  func.func @mlp_kernel(%arg0: i32, %arg1: memref<8x100xf32, #tpu.memory_space<vmem>>, %arg2: memref<100x100xf32, #tpu.memory_space<vmem>>, %arg3: memref<1x100xf32, #tpu.memory_space<vmem>>, %arg4: memref<100x50xf32, #tpu.memory_space<vmem>>, %arg5: memref<1x50xf32, #tpu.memory_space<vmem>>, %arg6: memref<50x70xf32, #tpu.memory_space<vmem>>, %arg7: memref<1x70xf32, #tpu.memory_space<vmem>>, %arg8: memref<70x20xf32, #tpu.memory_space<vmem>>, %arg9: memref<1x20xf32, #tpu.memory_space<vmem>>, %arg10: memref<20x4xf32, #tpu.memory_space<vmem>>, %arg11: memref<1x4xf32, #tpu.memory_space<vmem>>, %arg12: memref<8x4xf32, #tpu.memory_space<vmem>>) attributes {dimension_semantics = [#tpu.dimension_semantics<parallel>], iteration_bounds = array<i64: 1>, scalar_prefetch = 0 : i64, scratch_operands = 0 : i64, tpu.core_type = #tpu.core_type<tc>, window_params = [{transform_indices = @transform_0, window_bounds = array<i64: 8, 100>}, {pipeline_mode = #tpu.pipeline_mode<synchronous>, transform_indices = @transform_1, window_bounds = array<i64: 100, 100>}, {pipeline_mode = #tpu.pipeline_mode<synchronous>, transform_indices = @transform_2, window_bounds = array<i64: 1, 100>}, {pipeline_mode = #tpu.pipeline_mode<synchronous>, transform_indices = @transform_3, window_bounds = array<i64: 100, 50>}, {pipeline_mode = #tpu.pipeline_mode<synchronous>, transform_indices = @transform_4, window_bounds = array<i64: 1, 50>}, {pipeline_mode = #tpu.pipeline_mode<synchronous>, transform_indices = @transform_5, window_bounds = array<i64: 50, 70>}, {pipeline_mode = #tpu.pipeline_mode<synchronous>, transform_indices = @transform_6, window_bounds = array<i64: 1, 70>}, {pipeline_mode = #tpu.pipeline_mode<synchronous>, transform_indices = @transform_7, window_bounds = array<i64: 70, 20>}, {pipeline_mode = #tpu.pipeline_mode<synchronous>, transform_indices = @transform_8, window_bounds = array<i64: 1, 20>}, {pipeline_mode = #tpu.pipeline_mode<synchronous>, transform_indices = @transform_9, window_bounds = array<i64: 20, 4>}, {pipeline_mode = #tpu.pipeline_mode<synchronous>, transform_indices = @transform_10, window_bounds = array<i64: 1, 4>}, {transform_indices = @transform_11, window_bounds = array<i64: 8, 4>}]} {
    %c0 = arith.constant 0 : index
    %c0_0 = arith.constant 0 : index
    %0 = vector.load %arg1[%c0, %c0_0] : memref<8x100xf32, #tpu.memory_space<vmem>>, vector<8x100xf32>
    %c0_1 = arith.constant 0 : index
    %c0_2 = arith.constant 0 : index
    %1 = vector.load %arg2[%c0_1, %c0_2] : memref<100x100xf32, #tpu.memory_space<vmem>>, vector<100x100xf32>
    %cst = arith.constant dense<0.000000e+00> : vector<8x100xf32>
    %2 = tpu.matmul %0, %1, %cst {dimension_numbers = #tpu.dot_dimension_numbers<[1], [0], [0], [1], [0, 0, 1, 1], [], []>} : vector<8x100xf32>, vector<100x100xf32>, vector<8x100xf32> -> vector<8x100xf32>
    %c0_3 = arith.constant 0 : index
    %c0_4 = arith.constant 0 : index
    %3 = vector.load %arg3[%c0_3, %c0_4] : memref<1x100xf32, #tpu.memory_space<vmem>>, vector<1x100xf32>
    %4 = vector.broadcast %3 : vector<1x100xf32> to vector<8x100xf32>
    %5 = arith.addf %2, %4 : vector<8x100xf32>
    %cst_5 = arith.constant 5.000000e-01 : f32
    %6 = vector.broadcast %cst_5 : f32 to vector<8x100xf32>
    %7 = arith.mulf %6, %5 : vector<8x100xf32>
    %8 = math.tanh %7 : vector<8x100xf32>
    %cst_6 = arith.constant 5.000000e-01 : f32
    %9 = vector.broadcast %cst_6 : f32 to vector<8x100xf32>
    %10 = arith.mulf %9, %8 : vector<8x100xf32>
    %cst_7 = arith.constant 5.000000e-01 : f32
    %11 = vector.broadcast %cst_7 : f32 to vector<8x100xf32>
    %12 = arith.addf %10, %11 : vector<8x100xf32>
    %c0_8 = arith.constant 0 : index
    %c0_9 = arith.constant 0 : index
    %13 = vector.load %arg4[%c0_8, %c0_9] : memref<100x50xf32, #tpu.memory_space<vmem>>, vector<100x50xf32>
    %cst_10 = arith.constant dense<0.000000e+00> : vector<8x50xf32>
    %14 = tpu.matmul %12, %13, %cst_10 {dimension_numbers = #tpu.dot_dimension_numbers<[1], [0], [0], [1], [0, 0, 1, 1], [], []>} : vector<8x100xf32>, vector<100x50xf32>, vector<8x50xf32> -> vector<8x50xf32>
    %c0_11 = arith.constant 0 : index
    %c0_12 = arith.constant 0 : index
    %15 = vector.load %arg5[%c0_11, %c0_12] : memref<1x50xf32, #tpu.memory_space<vmem>>, vector<1x50xf32>
    %16 = vector.broadcast %15 : vector<1x50xf32> to vector<8x50xf32>
    %17 = arith.addf %14, %16 : vector<8x50xf32>
    %cst_13 = arith.constant 5.000000e-01 : f32
    %18 = vector.broadcast %cst_13 : f32 to vector<8x50xf32>
    %19 = arith.mulf %18, %17 : vector<8x50xf32>
    %20 = math.tanh %19 : vector<8x50xf32>
    %cst_14 = arith.constant 5.000000e-01 : f32
    %21 = vector.broadcast %cst_14 : f32 to vector<8x50xf32>
    %22 = arith.mulf %21, %20 : vector<8x50xf32>
    %cst_15 = arith.constant 5.000000e-01 : f32
    %23 = vector.broadcast %cst_15 : f32 to vector<8x50xf32>
    %24 = arith.addf %22, %23 : vector<8x50xf32>
    %c0_16 = arith.constant 0 : index
    %c0_17 = arith.constant 0 : index
    %25 = vector.load %arg6[%c0_16, %c0_17] : memref<50x70xf32, #tpu.memory_space<vmem>>, vector<50x70xf32>
    %cst_18 = arith.constant dense<0.000000e+00> : vector<8x70xf32>
    %26 = tpu.matmul %24, %25, %cst_18 {dimension_numbers = #tpu.dot_dimension_numbers<[1], [0], [0], [1], [0, 0, 1, 1], [], []>} : vector<8x50xf32>, vector<50x70xf32>, vector<8x70xf32> -> vector<8x70xf32>
    %c0_19 = arith.constant 0 : index
    %c0_20 = arith.constant 0 : index
    %27 = vector.load %arg7[%c0_19, %c0_20] : memref<1x70xf32, #tpu.memory_space<vmem>>, vector<1x70xf32>
    %28 = vector.broadcast %27 : vector<1x70xf32> to vector<8x70xf32>
    %29 = arith.addf %26, %28 : vector<8x70xf32>
    %cst_21 = arith.constant 5.000000e-01 : f32
    %30 = vector.broadcast %cst_21 : f32 to vector<8x70xf32>
    %31 = arith.mulf %30, %29 : vector<8x70xf32>
    %32 = math.tanh %31 : vector<8x70xf32>
    %cst_22 = arith.constant 5.000000e-01 : f32
    %33 = vector.broadcast %cst_22 : f32 to vector<8x70xf32>
    %34 = arith.mulf %33, %32 : vector<8x70xf32>
    %cst_23 = arith.constant 5.000000e-01 : f32
    %35 = vector.broadcast %cst_23 : f32 to vector<8x70xf32>
    %36 = arith.addf %34, %35 : vector<8x70xf32>
    %c0_24 = arith.constant 0 : index
    %c0_25 = arith.constant 0 : index
    %37 = vector.load %arg8[%c0_24, %c0_25] : memref<70x20xf32, #tpu.memory_space<vmem>>, vector<70x20xf32>
    %cst_26 = arith.constant dense<0.000000e+00> : vector<8x20xf32>
    %38 = tpu.matmul %36, %37, %cst_26 {dimension_numbers = #tpu.dot_dimension_numbers<[1], [0], [0], [1], [0, 0, 1, 1], [], []>} : vector<8x70xf32>, vector<70x20xf32>, vector<8x20xf32> -> vector<8x20xf32>
    %c0_27 = arith.constant 0 : index
    %c0_28 = arith.constant 0 : index
    %39 = vector.load %arg9[%c0_27, %c0_28] : memref<1x20xf32, #tpu.memory_space<vmem>>, vector<1x20xf32>
    %40 = vector.broadcast %39 : vector<1x20xf32> to vector<8x20xf32>
    %41 = arith.addf %38, %40 : vector<8x20xf32>
    %cst_29 = arith.constant 5.000000e-01 : f32
    %42 = vector.broadcast %cst_29 : f32 to vector<8x20xf32>
    %43 = arith.mulf %42, %41 : vector<8x20xf32>
    %44 = math.tanh %43 : vector<8x20xf32>
    %cst_30 = arith.constant 5.000000e-01 : f32
    %45 = vector.broadcast %cst_30 : f32 to vector<8x20xf32>
    %46 = arith.mulf %45, %44 : vector<8x20xf32>
    %cst_31 = arith.constant 5.000000e-01 : f32
    %47 = vector.broadcast %cst_31 : f32 to vector<8x20xf32>
    %48 = arith.addf %46, %47 : vector<8x20xf32>
    %c0_32 = arith.constant 0 : index
    %c0_33 = arith.constant 0 : index
    %49 = vector.load %arg10[%c0_32, %c0_33] : memref<20x4xf32, #tpu.memory_space<vmem>>, vector<20x4xf32>
    %cst_34 = arith.constant dense<0.000000e+00> : vector<8x4xf32>
    %50 = tpu.matmul %48, %49, %cst_34 {dimension_numbers = #tpu.dot_dimension_numbers<[1], [0], [0], [1], [0, 0, 1, 1], [], []>} : vector<8x20xf32>, vector<20x4xf32>, vector<8x4xf32> -> vector<8x4xf32>
    %c0_35 = arith.constant 0 : index
    %c0_36 = arith.constant 0 : index
    %51 = vector.load %arg11[%c0_35, %c0_36] : memref<1x4xf32, #tpu.memory_space<vmem>>, vector<1x4xf32>
    %52 = vector.broadcast %51 : vector<1x4xf32> to vector<8x4xf32>
    %53 = arith.addf %50, %52 : vector<8x4xf32>
    %c0_37 = arith.constant 0 : index
    %c0_38 = arith.constant 0 : index
    %54 = vector.load %arg12[%c0_37, %c0_38] : memref<8x4xf32, #tpu.memory_space<vmem>>, vector<8x4xf32>
    tpu.vector_store %arg12[%c0_37, %c0_38], %53 {strides = array<i32>} : memref<8x4xf32, #tpu.memory_space<vmem>>, vector<8x4xf32>,
    return
  }
  func.func @transform_0(%arg0: i32) -> (i32, i32) {
    %c0_i32 = arith.constant 0 : i32
    %c0_i32_0 = arith.constant 0 : i32
    return %arg0, %c0_i32 : i32, i32
  }
  func.func @transform_1(%arg0: i32) -> (i32, i32) {
    %c0_i32 = arith.constant 0 : i32
    %c0_i32_0 = arith.constant 0 : i32
    %c0_i32_1 = arith.constant 0 : i32
    return %c0_i32, %c0_i32_0 : i32, i32
  }
  func.func @transform_2(%arg0: i32) -> (i32, i32) {
    %c0_i32 = arith.constant 0 : i32
    %c0_i32_0 = arith.constant 0 : i32
    %c0_i32_1 = arith.constant 0 : i32
    return %c0_i32, %c0_i32_0 : i32, i32
  }
  func.func @transform_3(%arg0: i32) -> (i32, i32) {
    %c0_i32 = arith.constant 0 : i32
    %c0_i32_0 = arith.constant 0 : i32
    %c0_i32_1 = arith.constant 0 : i32
    return %c0_i32, %c0_i32_0 : i32, i32
  }
  func.func @transform_4(%arg0: i32) -> (i32, i32) {
    %c0_i32 = arith.constant 0 : i32
    %c0_i32_0 = arith.constant 0 : i32
    %c0_i32_1 = arith.constant 0 : i32
    return %c0_i32, %c0_i32_0 : i32, i32
  }
  func.func @transform_5(%arg0: i32) -> (i32, i32) {
    %c0_i32 = arith.constant 0 : i32
    %c0_i32_0 = arith.constant 0 : i32
    %c0_i32_1 = arith.constant 0 : i32
    return %c0_i32, %c0_i32_0 : i32, i32
  }
  func.func @transform_6(%arg0: i32) -> (i32, i32) {
    %c0_i32 = arith.constant 0 : i32
    %c0_i32_0 = arith.constant 0 : i32
    %c0_i32_1 = arith.constant 0 : i32
    return %c0_i32, %c0_i32_0 : i32, i32
  }
  func.func @transform_7(%arg0: i32) -> (i32, i32) {
    %c0_i32 = arith.constant 0 : i32
    %c0_i32_0 = arith.constant 0 : i32
    %c0_i32_1 = arith.constant 0 : i32
    return %c0_i32, %c0_i32_0 : i32, i32
  }
  func.func @transform_8(%arg0: i32) -> (i32, i32) {
    %c0_i32 = arith.constant 0 : i32
    %c0_i32_0 = arith.constant 0 : i32
    %c0_i32_1 = arith.constant 0 : i32
    return %c0_i32, %c0_i32_0 : i32, i32
  }
  func.func @transform_9(%arg0: i32) -> (i32, i32) {
    %c0_i32 = arith.constant 0 : i32
    %c0_i32_0 = arith.constant 0 : i32
    %c0_i32_1 = arith.constant 0 : i32
    return %c0_i32, %c0_i32_0 : i32, i32
  }
  func.func @transform_10(%arg0: i32) -> (i32, i32) {
    %c0_i32 = arith.constant 0 : i32
    %c0_i32_0 = arith.constant 0 : i32
    %c0_i32_1 = arith.constant 0 : i32
    return %c0_i32, %c0_i32_0 : i32, i32
  }
  func.func @transform_11(%arg0: i32) -> (i32, i32) {
    %c0_i32 = arith.constant 0 : i32
    %c0_i32_0 = arith.constant 0 : i32
    return %arg0, %c0_i32 : i32, i32
  }
}

</mosaic_0001>

<llo_original>
// kernel: net_forward.1
$region0: #{net_forward.1}
  #allocation0 [shape = 'u32[]', space=smem, size = 0x4, offset = 0x4, fixed_abs, tag = 'smem constant byte address 0x4 - core index']
  #allocation1 [shape = 'u32[144,128]{1,0:T(1,128)}', space=vmem, size = 0x12000, scoped, tag = 'internal scratch']
  %s0 = inlined_call_operand.vmem [shape: f32[8,100], index: 0, kind: input, shape index: {}]
  %s1 = inlined_call_operand.vmem [shape: f32[100,100], index: 1, kind: input, shape index: {}]
  %s2 = inlined_call_operand.vmem [shape: f32[1,100], index: 2, kind: input, shape index: {}]
  %s3 = inlined_call_operand.vmem [shape: f32[100,50], index: 3, kind: input, shape index: {}]
  %s4 = inlined_call_operand.vmem [shape: f32[1,50], index: 4, kind: input, shape index: {}]
  %s5 = inlined_call_operand.vmem [shape: f32[50,70], index: 5, kind: input, shape index: {}]
  %s6 = inlined_call_operand.vmem [shape: f32[1,70], index: 6, kind: input, shape index: {}]
  %s7 = inlined_call_operand.vmem [shape: f32[70,20], index: 7, kind: input, shape index: {}]
  %s8 = inlined_call_operand.vmem [shape: f32[1,20], index: 8, kind: input, shape index: {}]
  %s9 = inlined_call_operand.vmem [shape: f32[20,4], index: 9, kind: input, shape index: {}]
  %s10 = inlined_call_operand.vmem [shape: f32[1,4], index: 10, kind: input, shape index: {}]
  %s11 = inlined_call_operand.vmem [shape: f32[8,4], index: 11, kind: output, shape index: {}]
  %s12 = sld [smem:[#allocation0]]
  $region54: #{net_forward.1} parent=0
    _
  %s14 = ssub.s32 1, %s12
  %s15 = scalar_select 0, %s14, %s12
  // Predicated region
  $region2: #{net_forward.1} parent=0 // pred_check
    _
  $region3: #{net_forward.1} parent=0 // pred_check_branch
    %17 = sbr.rel (0) target = $region5
  $region4: #{net_forward.1} parent=0 // pred_region
    _
  $region5: #{net_forward.1} parent=0 // pred_fallthru
    _
  // Predicated region
  $region6: #{net_forward.1} parent=0 // pred_check
    _
  $region7: #{net_forward.1} parent=0 // pred_check_branch
    %19 = sbr.rel (0) target = $region9
  $region8: #{net_forward.1} parent=0 // pred_region
    _
  $region9: #{net_forward.1} parent=0 // pred_fallthru
    _
  // Predicated region
  $region10: #{net_forward.1} parent=0 // pred_check
    _
  $region11: #{net_forward.1} parent=0 // pred_check_branch
    %21 = sbr.rel (0) target = $region13
  $region12: #{net_forward.1} parent=0 // pred_region
    _
  $region13: #{net_forward.1} parent=0 // pred_fallthru
    _
  // Predicated region
  $region14: #{net_forward.1} parent=0 // pred_check
    _
  $region15: #{net_forward.1} parent=0 // pred_check_branch
    %23 = sbr.rel (0) target = $region17
  $region16: #{net_forward.1} parent=0 // pred_region
    _
  $region17: #{net_forward.1} parent=0 // pred_fallthru
    _
  // Predicated region
  $region18: #{net_forward.1} parent=0 // pred_check
    _
  $region19: #{net_forward.1} parent=0 // pred_check_branch
    %25 = sbr.rel (0) target = $region21
  $region20: #{net_forward.1} parent=0 // pred_region
    _
  $region21: #{net_forward.1} parent=0 // pred_fallthru
    _
  // Predicated region
  $region22: #{net_forward.1} parent=0 // pred_check
    _
  $region23: #{net_forward.1} parent=0 // pred_check_branch
    %27 = sbr.rel (0) target = $region25
  $region24: #{net_forward.1} parent=0 // pred_region
    _
  $region25: #{net_forward.1} parent=0 // pred_fallthru
    _
  // Predicated region
  $region26: #{net_forward.1} parent=0 // pred_check
    _
  $region27: #{net_forward.1} parent=0 // pred_check_branch
    %29 = sbr.rel (0) target = $region29
  $region28: #{net_forward.1} parent=0 // pred_region
    _
  $region29: #{net_forward.1} parent=0 // pred_fallthru
    _
  // Predicated region
  $region30: #{net_forward.1} parent=0 // pred_check
    _
  $region31: #{net_forward.1} parent=0 // pred_check_branch
    %31 = sbr.rel (0) target = $region33
  $region32: #{net_forward.1} parent=0 // pred_region
    _
  $region33: #{net_forward.1} parent=0 // pred_fallthru
    _
  // Predicated region
  $region34: #{net_forward.1} parent=0 // pred_check
    _
  $region35: #{net_forward.1} parent=0 // pred_check_branch
    %33 = sbr.rel (0) target = $region37
  $region36: #{net_forward.1} parent=0 // pred_region
    _
  $region37: #{net_forward.1} parent=0 // pred_fallthru
    _
  // Predicated region
  $region38: #{net_forward.1} parent=0 // pred_check
    _
  $region39: #{net_forward.1} parent=0 // pred_check_branch
    %35 = sbr.rel (0) target = $region41
  $region40: #{net_forward.1} parent=0 // pred_region
    _
  $region41: #{net_forward.1} parent=0 // pred_fallthru
    _
  // Predicated region
  $region42: #{net_forward.1} parent=0 // pred_check
    _
  $region43: #{net_forward.1} parent=0 // pred_check_branch
    %37 = sbr.rel (0) target = $region45
  $region44: #{net_forward.1} parent=0 // pred_region
    _
  $region45: #{net_forward.1} parent=0 // pred_fallthru
    _
  %v38 = vld [vmem:[%s0] sm:$0xff]
  %v39 = vld [vmem:[%s1] sm:$0xff]
  %v40 = vld [vmem:[%s1 + $0x8] sm:$0xff]
  %v41 = vld [vmem:[%s1 + $0x10] sm:$0xff]
  %v42 = vld [vmem:[%s1 + $0x18] sm:$0xff]
  %v43 = vld [vmem:[%s1 + $0x20] sm:$0xff]
  %v44 = vld [vmem:[%s1 + $0x28] sm:$0xff]
  %v45 = vld [vmem:[%s1 + $0x30] sm:$0xff]
  %v46 = vld [vmem:[%s1 + $0x38] sm:$0xff]
  %v47 = vld [vmem:[%s1 + $0x40] sm:$0xff]
  %v48 = vld [vmem:[%s1 + $0x48] sm:$0xff]
  %v49 = vld [vmem:[%s1 + $0x50] sm:$0xff]
  %v50 = vld [vmem:[%s1 + $0x58] sm:$0xff]
  %v51 = vld [vmem:[%s1 + $0x60] sm:$0xf]
  %v52 = vld [vmem:[%s2] sm:$0x1]
  %v54 = vlaneseq
  %v55 = vshrl.u32 %v54, 7
  %v56 = vsub.s32 0, %v55
  %v57 = vrot.slane %v52, %v56
  %vm59 = vcmask 818176
  %v61 = vsel %vm59, %v38, 0
  %vm63 = vcmask 1043456
  %v65 = vsel %vm63, %v51, 0
  %67 = vmatprep.subr.mxu0 0.0
  %68 = vmatpush1.msra.mxu0 %v39
  %69 = vmatprep.subr.mxu0 0.0
  %70 = vmatpush1.msra.mxu0 %v40
  %71 = vmatprep.subr.mxu0 0.0
  %72 = vmatpush1.msra.mxu0 %v41
  %73 = vmatprep.subr.mxu0 0.0
  %74 = vmatpush1.msra.mxu0 %v42
  %75 = vmatprep.subr.mxu0 0.0
  %76 = vmatpush1.msra.mxu0 %v43
  %77 = vmatprep.subr.mxu0 0.0
  %78 = vmatpush1.msra.mxu0 %v44
  %79 = vmatprep.subr.mxu0 0.0
  %80 = vmatpush1.msra.mxu0 %v45
  %81 = vmatprep.subr.mxu0 0.0
  %82 = vmatpush1.msra.mxu0 %v46
  %83 = vmatprep.subr.mxu0 0.0
  %84 = vmatpush1.msra.mxu0 %v47
  %85 = vmatprep.subr.mxu0 0.0
  %86 = vmatpush1.msra.mxu0 %v48
  %87 = vmatprep.subr.mxu0 0.0
  %88 = vmatpush1.msra.mxu0 %v49
  %89 = vmatprep.subr.mxu0 0.0
  %90 = vmatpush1.msra.mxu0 %v50
  %91 = vmatprep.subr.mxu0 0.0
  %92 = vmatpush1.msra.mxu0 %v65
  %93 = vmatprep.subr.mxu0 0.0
  %94 = vmatpush1.msra.mxu0 0.0
  %95 = vmatprep.subr.mxu0 0.0
  %96 = vmatpush1.msra.mxu0 0.0
  %97 = vmatprep.subr.mxu0 0.0
  %98 = vmatpush1.msra.mxu0 0.0
  %99 = vmatprep.subr.mxu0 0.0
  %100 = vmatpush1.msra.mxu0 0.0
  %101 = vmatprep.subr.mxu0 0.0
  %102 = vmatpush1.msra.mxu0 0.0
  %103 = vmatprep.subr.mxu0 0.0
  %104 = vmatpush1.msra.mxu0 0.0
  %105 = vmatprep.subr.mxu0 0.0
  %106 = vmatpush1.msra.mxu0 0.0
  %107 = vmatprep.subr.mxu0 0.0
  %108 = vmatpush1.msra.mxu0 0.0
  %109 = vmatprep.subr.mxu0 0.0
  %110 = vmatpush1.msra.mxu0 0.0
  %111 = vmatprep.subr.mxu0 0.0
  %112 = vmatpush1.msra.mxu0 0.0
  %113 = vmatprep.subr.mxu0 0.0
  %114 = vmatpush1.msra.mxu0 0.0
  %115 = vmatprep.subr.mxu0 0.0
  %116 = vmatpush1.msra.mxu0 0.0
  %117 = vmatprep.subr.mxu0 0.0
  %118 = vmatpush1.msra.mxu0 0.0
  %119 = vmatprep.subr.mxu0 0.0
  %120 = vmatpush1.msra.mxu0 0.0
  %121 = vmatprep.subr.mxu0 0.0
  %122 = vmatpush1.msra.mxu0 0.0
  %123 = vmatprep.subr.mxu0 0.0
  %124 = vmatpush1.msra.mxu0 0.0
  %125 = vmatprep.subr.mxu0 0.0
  %126 = vmatpush1.msra.mxu0 0.0
  %127 = vmatprep.subr.mxu0 0.0
  %128 = vmatpush1.msra.mxu0 0.0
  %129 = vmatprep.subr.mxu0 0.0
  %130 = vmatpush1.msra.mxu0 0.0
  %131 = vmatprep.mubr.f32.mxu0 0.0
  %132 = vmatmul.mubr.f32.gmra.mrb[0].mxu0 %v61
  %v133 = vpop.f32.mrb[0].mxu0
  %v134 = vadd.f32 %v57, %v133
  %v135 = vpop.f32.mrb[0].mxu0
  %136 = vdwg.mxu0
  %v137 = vmul.f32 %v134, 0.5
  %v138 = vtanh.pop %v137
  %v139 = vmul.f32 %v138, 0.5
  %v140 = vadd.f32 %v139, 0.5
  %v141 = vld [vmem:[%s3] sm:$0xff]
  %v142 = vld [vmem:[%s3 + $0x8] sm:$0xff]
  %v143 = vld [vmem:[%s3 + $0x10] sm:$0xff]
  %v144 = vld [vmem:[%s3 + $0x18] sm:$0xff]
  %v145 = vld [vmem:[%s3 + $0x20] sm:$0xff]
  %v146 = vld [vmem:[%s3 + $0x28] sm:$0xff]
  %v147 = vld [vmem:[%s3 + $0x30] sm:$0xff]
  %v148 = vld [vmem:[%s3 + $0x38] sm:$0xff]
  %v149 = vld [vmem:[%s3 + $0x40] sm:$0xff]
  %v150 = vld [vmem:[%s3 + $0x48] sm:$0xff]
  %v151 = vld [vmem:[%s3 + $0x50] sm:$0xff]
  %v152 = vld [vmem:[%s3 + $0x58] sm:$0xff]
  %v153 = vld [vmem:[%s3 + $0x60] sm:$0xf]
  %v154 = vld [vmem:[%s4] sm:$0x1]
  %v156 = vlaneseq
  %v157 = vshrl.u32 %v156, 7
  %v158 = vsub.s32 0, %v157
  %v159 = vrot.slane %v154, %v158
  %v162 = vsel %vm59, %v140, 0
  %v165 = vsel %vm63, %v153, 0
  %167 = vmatprep.subr.mxu0 0.0
  %168 = vmatpush1.msra.mxu0 %v141
  %169 = vmatprep.subr.mxu0 0.0
  %170 = vmatpush1.msra.mxu0 %v142
  %171 = vmatprep.subr.mxu0 0.0
  %172 = vmatpush1.msra.mxu0 %v143
  %173 = vmatprep.subr.mxu0 0.0
  %174 = vmatpush1.msra.mxu0 %v144
  %175 = vmatprep.subr.mxu0 0.0
  %176 = vmatpush1.msra.mxu0 %v145
  %177 = vmatprep.subr.mxu0 0.0
  %178 = vmatpush1.msra.mxu0 %v146
  %179 = vmatprep.subr.mxu0 0.0
  %180 = vmatpush1.msra.mxu0 %v147
  %181 = vmatprep.subr.mxu0 0.0
  %182 = vmatpush1.msra.mxu0 %v148
  %183 = vmatprep.subr.mxu0 0.0
  %184 = vmatpush1.msra.mxu0 %v149
  %185 = vmatprep.subr.mxu0 0.0
  %186 = vmatpush1.msra.mxu0 %v150
  %187 = vmatprep.subr.mxu0 0.0
  %188 = vmatpush1.msra.mxu0 %v151
  %189 = vmatprep.subr.mxu0 0.0
  %190 = vmatpush1.msra.mxu0 %v152
  %191 = vmatprep.subr.mxu0 0.0
  %192 = vmatpush1.msra.mxu0 %v165
  %193 = vmatprep.subr.mxu0 0.0
  %194 = vmatpush1.msra.mxu0 0.0
  %195 = vmatprep.subr.mxu0 0.0
  %196 = vmatpush1.msra.mxu0 0.0
  %197 = vmatprep.subr.mxu0 0.0
  %198 = vmatpush1.msra.mxu0 0.0
  %199 = vmatprep.subr.mxu0 0.0
  %200 = vmatpush1.msra.mxu0 0.0
  %201 = vmatprep.subr.mxu0 0.0
  %202 = vmatpush1.msra.mxu0 0.0
  %203 = vmatprep.subr.mxu0 0.0
  %204 = vmatpush1.msra.mxu0 0.0
  %205 = vmatprep.subr.mxu0 0.0
  %206 = vmatpush1.msra.mxu0 0.0
  %207 = vmatprep.subr.mxu0 0.0
  %208 = vmatpush1.msra.mxu0 0.0
  %209 = vmatprep.subr.mxu0 0.0
  %210 = vmatpush1.msra.mxu0 0.0
  %211 = vmatprep.subr.mxu0 0.0
  %212 = vmatpush1.msra.mxu0 0.0
  %213 = vmatprep.subr.mxu0 0.0
  %214 = vmatpush1.msra.mxu0 0.0
  %215 = vmatprep.subr.mxu0 0.0
  %216 = vmatpush1.msra.mxu0 0.0
  %217 = vmatprep.subr.mxu0 0.0
  %218 = vmatpush1.msra.mxu0 0.0
  %219 = vmatprep.subr.mxu0 0.0
  %220 = vmatpush1.msra.mxu0 0.0
  %221 = vmatprep.subr.mxu0 0.0
  %222 = vmatpush1.msra.mxu0 0.0
  %223 = vmatprep.subr.mxu0 0.0
  %224 = vmatpush1.msra.mxu0 0.0
  %225 = vmatprep.subr.mxu0 0.0
  %226 = vmatpush1.msra.mxu0 0.0
  %227 = vmatprep.subr.mxu0 0.0
  %228 = vmatpush1.msra.mxu0 0.0
  %229 = vmatprep.subr.mxu0 0.0
  %230 = vmatpush1.msra.mxu0 0.0
  %231 = vmatprep.mubr.f32.mxu0 0.0
  %232 = vmatmul.mubr.f32.gmra.mrb[0].mxu0 %v162
  %v233 = vpop.f32.mrb[0].mxu0
  %v234 = vadd.f32 %v159, %v233
  %v235 = vpop.f32.mrb[0].mxu0
  %236 = vdwg.mxu0
  %v237 = vmul.f32 %v234, 0.5
  %v238 = vtanh.pop %v237
  %v239 = vmul.f32 %v238, 0.5
  %v240 = vadd.f32 %v239, 0.5
  %v241 = vld [vmem:[%s5] sm:$0xff]
  %v242 = vld [vmem:[%s5 + $0x8] sm:$0xff]
  %v243 = vld [vmem:[%s5 + $0x10] sm:$0xff]
  %v244 = vld [vmem:[%s5 + $0x18] sm:$0xff]
  %v245 = vld [vmem:[%s5 + $0x20] sm:$0xff]
  %v246 = vld [vmem:[%s5 + $0x28] sm:$0xff]
  %v247 = vld [vmem:[%s5 + $0x30] sm:$0x3]
  %v248 = vld [vmem:[%s6] sm:$0x1]
  %v250 = vlaneseq
  %v251 = vshrl.u32 %v250, 7
  %v252 = vsub.s32 0, %v251
  %v253 = vrot.slane %v248, %v252
  %vm255 = vcmask 408576
  %v257 = vsel %vm255, %v240, 0
  %vm259 = vcmask 1041408
  %v261 = vsel %vm259, %v247, 0
  %263 = vmatprep.subr.mxu0 0.0
  %264 = vmatpush1.msra.mxu0 %v241
  %265 = vmatprep.subr.mxu0 0.0
  %266 = vmatpush1.msra.mxu0 %v242
  %267 = vmatprep.subr.mxu0 0.0
  %268 = vmatpush1.msra.mxu0 %v243
  %269 = vmatprep.subr.mxu0 0.0
  %270 = vmatpush1.msra.mxu0 %v244
  %271 = vmatprep.subr.mxu0 0.0
  %272 = vmatpush1.msra.mxu0 %v245
  %273 = vmatprep.subr.mxu0 0.0
  %274 = vmatpush1.msra.mxu0 %v246
  %275 = vmatprep.subr.mxu0 0.0
  %276 = vmatpush1.msra.mxu0 %v261
  %277 = vmatprep.subr.mxu0 0.0
  %278 = vmatpush1.msra.mxu0 0.0
  %279 = vmatprep.subr.mxu0 0.0
  %280 = vmatpush1.msra.mxu0 0.0
  %281 = vmatprep.subr.mxu0 0.0
  %282 = vmatpush1.msra.mxu0 0.0
  %283 = vmatprep.subr.mxu0 0.0
  %284 = vmatpush1.msra.mxu0 0.0
  %285 = vmatprep.subr.mxu0 0.0
  %286 = vmatpush1.msra.mxu0 0.0
  %287 = vmatprep.subr.mxu0 0.0
  %288 = vmatpush1.msra.mxu0 0.0
  %289 = vmatprep.subr.mxu0 0.0
  %290 = vmatpush1.msra.mxu0 0.0
  %291 = vmatprep.subr.mxu0 0.0
  %292 = vmatpush1.msra.mxu0 0.0
  %293 = vmatprep.subr.mxu0 0.0
  %294 = vmatpush1.msra.mxu0 0.0
  %295 = vmatprep.subr.mxu0 0.0
  %296 = vmatpush1.msra.mxu0 0.0
  %297 = vmatprep.subr.mxu0 0.0
  %298 = vmatpush1.msra.mxu0 0.0
  %299 = vmatprep.subr.mxu0 0.0
  %300 = vmatpush1.msra.mxu0 0.0
  %301 = vmatprep.subr.mxu0 0.0
  %302 = vmatpush1.msra.mxu0 0.0
  %303 = vmatprep.subr.mxu0 0.0
  %304 = vmatpush1.msra.mxu0 0.0
  %305 = vmatprep.subr.mxu0 0.0
  %306 = vmatpush1.msra.mxu0 0.0
  %307 = vmatprep.subr.mxu0 0.0
  %308 = vmatpush1.msra.mxu0 0.0
  %309 = vmatprep.subr.mxu0 0.0
  %310 = vmatpush1.msra.mxu0 0.0
  %311 = vmatprep.subr.mxu0 0.0
  %312 = vmatpush1.msra.mxu0 0.0
  %313 = vmatprep.subr.mxu0 0.0
  %314 = vmatpush1.msra.mxu0 0.0
  %315 = vmatprep.subr.mxu0 0.0
  %316 = vmatpush1.msra.mxu0 0.0
  %317 = vmatprep.subr.mxu0 0.0
  %318 = vmatpush1.msra.mxu0 0.0
  %319 = vmatprep.subr.mxu0 0.0
  %320 = vmatpush1.msra.mxu0 0.0
  %321 = vmatprep.subr.mxu0 0.0
  %322 = vmatpush1.msra.mxu0 0.0
  %323 = vmatprep.subr.mxu0 0.0
  %324 = vmatpush1.msra.mxu0 0.0
  %325 = vmatprep.subr.mxu0 0.0
  %326 = vmatpush1.msra.mxu0 0.0
  %327 = vmatprep.mubr.f32.mxu0 0.0
  %328 = vmatmul.mubr.f32.gmra.mrb[0].mxu0 %v257
  %v329 = vpop.f32.mrb[0].mxu0
  %v330 = vadd.f32 %v253, %v329
  %v331 = vpop.f32.mrb[0].mxu0
  %332 = vdwg.mxu0
  %v333 = vmul.f32 %v330, 0.5
  %v334 = vtanh.pop %v333
  %v335 = vmul.f32 %v334, 0.5
  %v336 = vadd.f32 %v335, 0.5
  %v337 = vld [vmem:[%s7] sm:$0xff]
  %v338 = vld [vmem:[%s7 + $0x8] sm:$0xff]
  %v339 = vld [vmem:[%s7 + $0x10] sm:$0xff]
  %v340 = vld [vmem:[%s7 + $0x18] sm:$0xff]
  %v341 = vld [vmem:[%s7 + $0x20] sm:$0xff]
  %v342 = vld [vmem:[%s7 + $0x28] sm:$0xff]
  %v343 = vld [vmem:[%s7 + $0x30] sm:$0xff]
  %v344 = vld [vmem:[%s7 + $0x38] sm:$0xff]
  %v345 = vld [vmem:[%s7 + $0x40] sm:$0x3f]
  %v346 = vld [vmem:[%s8] sm:$0x1]
  %v348 = vlaneseq
  %v349 = vshrl.u32 %v348, 7
  %v350 = vsub.s32 0, %v349
  %v351 = vrot.slane %v346, %v350
  %vm353 = vcmask 572416
  %v355 = vsel %vm353, %v336, 0
  %vm357 = vcmask 1045504
  %v359 = vsel %vm357, %v345, 0
  %361 = vmatprep.subr.mxu0 0.0
  %362 = vmatpush1.msra.mxu0 %v337
  %363 = vmatprep.subr.mxu0 0.0
  %364 = vmatpush1.msra.mxu0 %v338
  %365 = vmatprep.subr.mxu0 0.0
  %366 = vmatpush1.msra.mxu0 %v339
  %367 = vmatprep.subr.mxu0 0.0
  %368 = vmatpush1.msra.mxu0 %v340
  %369 = vmatprep.subr.mxu0 0.0
  %370 = vmatpush1.msra.mxu0 %v341
  %371 = vmatprep.subr.mxu0 0.0
  %372 = vmatpush1.msra.mxu0 %v342
  %373 = vmatprep.subr.mxu0 0.0
  %374 = vmatpush1.msra.mxu0 %v343
  %375 = vmatprep.subr.mxu0 0.0
  %376 = vmatpush1.msra.mxu0 %v344
  %377 = vmatprep.subr.mxu0 0.0
  %378 = vmatpush1.msra.mxu0 %v359
  %379 = vmatprep.subr.mxu0 0.0
  %380 = vmatpush1.msra.mxu0 0.0
  %381 = vmatprep.subr.mxu0 0.0
  %382 = vmatpush1.msra.mxu0 0.0
  %383 = vmatprep.subr.mxu0 0.0
  %384 = vmatpush1.msra.mxu0 0.0
  %385 = vmatprep.subr.mxu0 0.0
  %386 = vmatpush1.msra.mxu0 0.0
  %387 = vmatprep.subr.mxu0 0.0
  %388 = vmatpush1.msra.mxu0 0.0
  %389 = vmatprep.subr.mxu0 0.0
  %390 = vmatpush1.msra.mxu0 0.0
  %391 = vmatprep.subr.mxu0 0.0
  %392 = vmatpush1.msra.mxu0 0.0
  %393 = vmatprep.subr.mxu0 0.0
  %394 = vmatpush1.msra.mxu0 0.0
  %395 = vmatprep.subr.mxu0 0.0
  %396 = vmatpush1.msra.mxu0 0.0
  %397 = vmatprep.subr.mxu0 0.0
  %398 = vmatpush1.msra.mxu0 0.0
  %399 = vmatprep.subr.mxu0 0.0
  %400 = vmatpush1.msra.mxu0 0.0
  %401 = vmatprep.subr.mxu0 0.0
  %402 = vmatpush1.msra.mxu0 0.0
  %403 = vmatprep.subr.mxu0 0.0
  %404 = vmatpush1.msra.mxu0 0.0
  %405 = vmatprep.subr.mxu0 0.0
  %406 = vmatpush1.msra.mxu0 0.0
  %407 = vmatprep.subr.mxu0 0.0
  %408 = vmatpush1.msra.mxu0 0.0
  %409 = vmatprep.subr.mxu0 0.0
  %410 = vmatpush1.msra.mxu0 0.0
  %411 = vmatprep.subr.mxu0 0.0
  %412 = vmatpush1.msra.mxu0 0.0
  %413 = vmatprep.subr.mxu0 0.0
  %414 = vmatpush1.msra.mxu0 0.0
  %415 = vmatprep.subr.mxu0 0.0
  %416 = vmatpush1.msra.mxu0 0.0
  %417 = vmatprep.subr.mxu0 0.0
  %418 = vmatpush1.msra.mxu0 0.0
  %419 = vmatprep.subr.mxu0 0.0
  %420 = vmatpush1.msra.mxu0 0.0
  %421 = vmatprep.subr.mxu0 0.0
  %422 = vmatpush1.msra.mxu0 0.0
  %423 = vmatprep.subr.mxu0 0.0
  %424 = vmatpush1.msra.mxu0 0.0
  %425 = vmatprep.mubr.f32.mxu0 0.0
  %426 = vmatmul.mubr.f32.gmra.mrb[0].mxu0 %v355
  %v427 = vpop.f32.mrb[0].mxu0
  %v428 = vadd.f32 %v351, %v427
  %v429 = vpop.f32.mrb[0].mxu0
  %430 = vdwg.mxu0
  %v431 = vmul.f32 %v428, 0.5
  %v432 = vtanh.pop %v431
  %v433 = vmul.f32 %v432, 0.5
  %v434 = vadd.f32 %v433, 0.5
  %v435 = vld [vmem:[%s9] sm:$0xff]
  %v436 = vld [vmem:[%s9 + $0x8] sm:$0xff]
  %v437 = vld [vmem:[%s9 + $0x10] sm:$0xf]
  %v438 = vld [vmem:[%s10] sm:$0x1]
  %v440 = vlaneseq
  %v441 = vshrl.u32 %v440, 7
  %v442 = vsub.s32 0, %v441
  %v443 = vrot.slane %v438, %v442
  %vm445 = vcmask 162816
  %v447 = vsel %vm445, %v434, 0
  %v450 = vsel %vm63, %v437, 0
  %452 = vmatprep.subr.mxu0 0.0
  %453 = vmatpush1.msra.mxu0 %v435
  %454 = vmatprep.subr.mxu0 0.0
  %455 = vmatpush1.msra.mxu0 %v436
  %456 = vmatprep.subr.mxu0 0.0
  %457 = vmatpush1.msra.mxu0 %v450
  %458 = vmatprep.subr.mxu0 0.0
  %459 = vmatpush1.msra.mxu0 0.0
  %460 = vmatprep.subr.mxu0 0.0
  %461 = vmatpush1.msra.mxu0 0.0
  %462 = vmatprep.subr.mxu0 0.0
  %463 = vmatpush1.msra.mxu0 0.0
  %464 = vmatprep.subr.mxu0 0.0
  %465 = vmatpush1.msra.mxu0 0.0
  %466 = vmatprep.subr.mxu0 0.0
  %467 = vmatpush1.msra.mxu0 0.0
  %468 = vmatprep.subr.mxu0 0.0
  %469 = vmatpush1.msra.mxu0 0.0
  %470 = vmatprep.subr.mxu0 0.0
  %471 = vmatpush1.msra.mxu0 0.0
  %472 = vmatprep.subr.mxu0 0.0
  %473 = vmatpush1.msra.mxu0 0.0
  %474 = vmatprep.subr.mxu0 0.0
  %475 = vmatpush1.msra.mxu0 0.0
  %476 = vmatprep.subr.mxu0 0.0
  %477 = vmatpush1.msra.mxu0 0.0
  %478 = vmatprep.subr.mxu0 0.0
  %479 = vmatpush1.msra.mxu0 0.0
  %480 = vmatprep.subr.mxu0 0.0
  %481 = vmatpush1.msra.mxu0 0.0
  %482 = vmatprep.subr.mxu0 0.0
  %483 = vmatpush1.msra.mxu0 0.0
  %484 = vmatprep.subr.mxu0 0.0
  %485 = vmatpush1.msra.mxu0 0.0
  %486 = vmatprep.subr.mxu0 0.0
  %487 = vmatpush1.msra.mxu0 0.0
  %488 = vmatprep.subr.mxu0 0.0
  %489 = vmatpush1.msra.mxu0 0.0
  %490 = vmatprep.subr.mxu0 0.0
  %491 = vmatpush1.msra.mxu0 0.0
  %492 = vmatprep.subr.mxu0 0.0
  %493 = vmatpush1.msra.mxu0 0.0
  %494 = vmatprep.subr.mxu0 0.0
  %495 = vmatpush1.msra.mxu0 0.0
  %496 = vmatprep.subr.mxu0 0.0
  %497 = vmatpush1.msra.mxu0 0.0
  %498 = vmatprep.subr.mxu0 0.0
  %499 = vmatpush1.msra.mxu0 0.0
  %500 = vmatprep.subr.mxu0 0.0
  %501 = vmatpush1.msra.mxu0 0.0
  %502 = vmatprep.subr.mxu0 0.0
  %503 = vmatpush1.msra.mxu0 0.0
  %504 = vmatprep.subr.mxu0 0.0
  %505 = vmatpush1.msra.mxu0 0.0
  %506 = vmatprep.subr.mxu0 0.0
  %507 = vmatpush1.msra.mxu0 0.0
  %508 = vmatprep.subr.mxu0 0.0
  %509 = vmatpush1.msra.mxu0 0.0
  %510 = vmatprep.subr.mxu0 0.0
  %511 = vmatpush1.msra.mxu0 0.0
  %512 = vmatprep.subr.mxu0 0.0
  %513 = vmatpush1.msra.mxu0 0.0
  %514 = vmatprep.subr.mxu0 0.0
  %515 = vmatpush1.msra.mxu0 0.0
  %516 = vmatprep.mubr.f32.mxu0 0.0
  %517 = vmatmul.mubr.f32.gmra.mrb[0].mxu0 %v447
  %v518 = vpop.f32.mrb[0].mxu0
  %v519 = vadd.f32 %v443, %v518
  %v520 = vpop.f32.mrb[0].mxu0
  %521 = vdwg.mxu0
  %vm522 = vcmask 31744
  %523 = vst.msk [vmem:[%s11] sm:$0xff] %vm522, %v519
  // Predicated region
  $region46: #{net_forward.1} parent=0 // pred_check
    _
  $region47: #{net_forward.1} parent=0 // pred_check_branch
    %525 = sbr.rel (0) target = $region49
  $region48: #{net_forward.1} parent=0 // pred_region
    _
  $region49: #{net_forward.1} parent=0 // pred_fallthru
    _
  // Predicated region
  $region50: #{net_forward.1} parent=0 // pred_check
    _
  $region51: #{net_forward.1} parent=0 // pred_check_branch
    %527 = sbr.rel (0) target = $region53
  $region52: #{net_forward.1} parent=0 // pred_region
    _
  $region53: #{net_forward.1} parent=0 // pred_fallthru
    _

</llo_original>
